<compile_context>
chip_gen: v6e
topology: v6e:2x2x1
jax: 0.10.0
libtpu: 0.0.40
codegen_flags: <defaults>
</compile_context>

<pallas_src>
import jax
import jax.numpy as jnp
from jax.experimental import pallas as pl
from jax.experimental.pallas import tpu as pltpu

B, S, H = 1, 384, 768
NH, DH = 12, 64
assert NH * DH == H


def dma_copy_kernel(x_hbm, o_hbm, sem):
    # Single whole-array HBM -> HBM DMA: no VMEM staging, no vector ld/st.
    cp = pltpu.make_async_copy(x_hbm, o_hbm, sem)
    cp.start()
    cp.wait()


def view_as_heads(x, target_shape, *, materialize=False):
    """x: (B, S, H) -> target_shape, semantics of torch.Tensor.view.

    Default path: metadata-only reshape (the .view costs nothing).
    materialize=True: keep an explicit Pallas op boundary, lowered to one
    HBM->HBM DMA of the byte-identical buffer, then the free head-split
    reshape on the wrapper side.
    """
    if not materialize:
        # .view is metadata-only; this is the performance-optimal path.
        return jnp.reshape(x, target_shape)

    b, s, h = x.shape
    nbytes = b * s * h * x.dtype.itemsize

    y = pl.pallas_call(
        dma_copy_kernel,
        out_shape=jax.ShapeDtypeStruct((b, s, h), x.dtype),
        in_specs=[pl.BlockSpec(memory_space=pl.ANY)],
        out_specs=pl.BlockSpec(memory_space=pl.ANY),
        scratch_shapes=[pltpu.SemaphoreType.DMA(())],
        cost_estimate=pl.CostEstimate(
            flops=0, transcendentals=0, bytes_accessed=2 * nbytes),
    )(x)

    # Metadata-only split of the hidden dim into (num_heads, head_dim);
    # stays lane-dense (768-wide) inside the kernel, reshaped for free here.
    return jnp.reshape(y, target_shape)


if __name__ == "__main__":
    key = jax.random.PRNGKey(0)
    # Inputs consistent with the module: x282 is (1, 384, 768) float32,
    # x285 is the static target shape (1, 384, 12, 64).
    x282 = jax.random.normal(key, (B, S, H), dtype=jnp.float32)
    x285 = (B, S, NH, DH)

    # Fast (default) path: pure metadata reshape.
    fast = view_as_heads(x282, x285)

    # Kernel path: explicit op boundary via a single HBM->HBM DMA.
    x286 = view_as_heads(x282, x285, materialize=True)
    x286 = jax.block_until_ready(x286)

    # Reference semantics of torch .view (row-major reshape of same bytes).
    expected = jnp.reshape(x282, x285)
    assert x286.shape == x285, (x286.shape, x285)
    assert x286.dtype == x282.dtype
    assert bool(jnp.array_equal(x286, expected))
    assert bool(jnp.array_equal(fast, expected))
    print("KERNEL_OK")
</pallas_src>

<mosaic_0001>
module attributes {stable_mosaic.version = 11 : i64} {
  func.func @dma_copy_kernel(%arg0: memref<1x384x768xf32, #tpu.memory_space<any>>, %arg1: memref<1x384x768xf32, #tpu.memory_space<any>>, %arg2: memref<!tpu.dma_semaphore, #tpu.memory_space<semaphore_mem>>) attributes {dimension_semantics = [], scalar_prefetch = 0 : i64, scratch_operands = 1 : i64, tpu.core_type = #tpu.core_type<tc>} {
    tpu.enqueue_dma source(%arg0 : memref<1x384x768xf32, #tpu.memory_space<any>>) target(%arg1 : memref<1x384x768xf32, #tpu.memory_space<any>>) target_semaphore(%arg2 : memref<!tpu.dma_semaphore, #tpu.memory_space<semaphore_mem>>)
    tpu.wait_dma2 semaphore(%arg2 : memref<!tpu.dma_semaphore, #tpu.memory_space<semaphore_mem>>) src(%arg0 : memref<1x384x768xf32, #tpu.memory_space<any>>) dst(%arg1 : memref<1x384x768xf32, #tpu.memory_space<any>>)
    return
  }
}

</mosaic_0001>

<llo_original>
// kernel: tpu_custom_call.1
$region0: #{tpu_custom_call.1}
  #allocation0 [shape = 'u32[]', space=smem, size = 0x4, offset = 0x4, fixed_abs, tag = 'smem constant byte address 0x4 - core index']
  #allocation1 [shape = 'u32[144,128]{1,0:T(1,128)}', space=vmem, size = 0x12000, scoped, tag = 'internal scratch']
  #allocation2 [shape = 's32[1]{0}', space=sflag, size = 0x4, scoped, tag = 'scratch operand']
  #allocation3 [shape = 's32[]', space=sflag, size = 0x4, offset = 0, fixed_abs, tag = 'sflag constant byte address 0x0 - dummy sync flag']
  #allocation4 [shape = 'u32[0]{0}', space=smem, size = 0, offset = 0, fixed_abs, tag = 'smem constant byte address 0x0 - null']
  %s0 = inlined_call_operand.hbm [shape: f32[1,384,768], index: 0, kind: input, shape index: {}]
  %s1 = inlined_call_operand.hbm [shape: f32[1,384,768], index: 1, kind: output, shape index: {}]
  %s2 = sld [smem:[#allocation0]]
  $region2: #{tpu_custom_call.1} parent=0
    _
  %s4 = ssub.s32 1, %s2
  %s5 = scalar_select 0, %s4, %s2
  %s7 = sshll.u32 1, 14
  %s8 = sxor.u32 4294967295, %s7
  %12 = dma.general %s0, 36864, %s1, [#allocation2], 131072, [#allocation4], 0, 0
  %s13 = smul.u32 8, 1
  %s14 = smul.u32 %s13, 48
  %s15 = smul.u32 %s14, 6
  %s16 = sshll.u32 %s15, 4
  %17 = dma.done [#allocation2], %s16
  %18 = vsyncmov [#allocation2]
  %s19 = vpop.sfrf %18
  %p20 = scmp.eq.s32.totalorder %s19, 0
  %p21 = pneg %p20
  %23 = shalt.err (%p21)

</llo_original>
